<compile_context>
chip_gen: v7x
topology: tpu7x:2x2x1
jax: 0.10.0
libtpu: 0.0.40
codegen_flags: <defaults>
</compile_context>

<pallas_src>
import jax
import jax.numpy as jnp
from jax.experimental import pallas as pl
from jax.experimental.pallas import tpu as pltpu


# ---------------------------------------------------------------------------
# Kernels
# ---------------------------------------------------------------------------
def _kron_kernel(x_ref, w_ref, b_ref, o_ref):
    # x_ref: (TB, N*D) flat batch tile (input dtype)
    # w_ref: (N*D, N*D) = kron(W^T, I_D), resident, matmul dtype (bf16 default)
    # b_ref: (1, N*D)  f32 bias, already repeated D times
    # o_ref: (TB, N*D)
    x = x_ref[...].astype(w_ref.dtype)                 # bf16 MXU, f32 accumulate
    y = jnp.dot(x, w_ref[...], preferred_element_type=jnp.float32)
    o_ref[...] = (y + b_ref[...]).astype(o_ref.dtype)


def _block_kernel(x_ref, w_ref, b_ref, o_ref):
    # Fallback for shapes where the kron path would blow VMEM or be MXU-bound.
    # Per-batch dots keep each dot_general result in (N, D) order, so Mosaic
    # never has to transpose a (N, TB, D) batched-einsum result.
    # x_ref: (TB, N, D), w_ref: (N, N), b_ref: (N, 1), o_ref: (TB, N, D)
    w = w_ref[...]
    bias = b_ref[...]
    for i in range(x_ref.shape[0]):                    # static unroll over the tile
        y = jnp.dot(w, x_ref[i].astype(w.dtype),
                    preferred_element_type=jnp.float32)
        o_ref[i] = (y + bias).astype(o_ref.dtype)


# ---------------------------------------------------------------------------
# Wrapper helpers
# ---------------------------------------------------------------------------
def _vmem_capacity_bytes():
    try:
        return int(pltpu.get_tpu_info().vmem_capacity_bytes)
    except Exception:
        return 64 << 20                                # conservative (v7x per-TC)


def _round_up(v, m):
    return -(-v // m) * m


def _pick_batch_tile(B, row_bytes, target_bytes=2 << 20):
    """~target_bytes per x tile; rows in MXU-friendly multiples (or the full B)."""
    tb = max(1, target_bytes // max(row_bytes, 1))
    if tb >= B:
        return B
    if tb >= 256:
        tb = (tb // 256) * 256
    elif tb >= 16:
        tb = (tb // 16) * 16
    else:
        tb = max(8, (tb // 8) * 8)
    return min(tb, B)


def _split_for_megacore(B, tb):
    # v7x has 2 TensorCores; a single-step grid leaves one of them idle.
    if tb >= B and B >= 16:
        half = _round_up(_round_up(B, 2) // 2, 8)
        if half < B:
            return half
    return tb


# Conservative (min over v5e/v6e/v7x) N*D cap above which the kron path's
# D-fold redundant FLOPs make it MXU-bound: arithmetic intensity is ~ND/4
# flops/byte for f32 I/O vs the chip's matmul-rate / HBM-BW ratio.
_KRON_ND_MAX = {
    jnp.dtype(jnp.bfloat16): 768,
    jnp.dtype(jnp.float32): 256,
}


def make_spatial_fc_kron_params(w, b, feat_dim, matmul_dtype=jnp.bfloat16):
    """Precompute the resident kron weight / repeated bias once per (w, b)."""
    n = w.shape[0]
    eye = jnp.eye(feat_dim, dtype=jnp.float32)
    wk = jnp.kron(w.astype(jnp.float32).T, eye).astype(matmul_dtype)
    bk = jnp.repeat(b.astype(jnp.float32), feat_dim).reshape(1, n * feat_dim)
    return wk, bk


# ---------------------------------------------------------------------------
# Wrapper
# ---------------------------------------------------------------------------
def spatial_fc(x, w, b, *, batch_tile=None, matmul_dtype=jnp.bfloat16,
               kron_params=None, kron_weight_limit_bytes=None):
    """out[b, n, d] = sum_m W[n, m] * x[b, m, d] + bias[n].

    Equivalent to Spatial_FC: transpose(1,2) -> nn.Linear(N, N) -> transpose(1,2).
    """
    B, N, D = x.shape
    ND = N * D
    itemsize = jnp.dtype(x.dtype).itemsize
    mm_dtype = jnp.dtype(matmul_dtype)
    wk_bytes = ND * ND * mm_dtype.itemsize
    vmem_cap = _vmem_capacity_bytes()

    if kron_weight_limit_bytes is None:
        # Keep the (single-buffered) resident weight well under scoped VMEM;
        # this is what shrinks the fast path on v7x (64 MiB/TC) vs v5e/v6e.
        kron_weight_limit_bytes = min(8 << 20, vmem_cap // 8)
    nd_cap = _KRON_ND_MAX.get(mm_dtype, 256)

    use_kron = (wk_bytes <= kron_weight_limit_bytes) and (ND <= nd_cap)

    if use_kron:
        # Lane-dense path: flat (B, N*D) rows, one MXU matmul per batch tile.
        # kron(W^T, I_D)[m*D+e, n*D+d] = W[n, m] * (e == d), so
        #   (x_flat @ wk)[b, n*D+d] = sum_m W[n, m] * x[b, m, d].
        if kron_params is None:
            kron_params = make_spatial_fc_kron_params(w, b, D, mm_dtype)
        wk, bk = kron_params
        wk = wk.astype(mm_dtype)

        xf = x.reshape(B, ND)                          # free reshape (row-major)
        if batch_tile is None:
            tb = _split_for_megacore(B, _pick_batch_tile(B, ND * itemsize))
        else:
            tb = min(batch_tile, B)
            if tb < B:
                tb = min(max(8, (tb // 8) * 8), B)

        tile_bytes = tb * ND * itemsize
        vmem_limit = wk_bytes + ND * 4 + 4 * tile_bytes + (8 << 20)
        vmem_limit = int(min(max(vmem_limit, 16 << 20), min(vmem_cap, 64 << 20)))

        out = pl.pallas_call(
            _kron_kernel,
            out_shape=jax.ShapeDtypeStruct((B, ND), x.dtype),
            grid_spec=pltpu.PrefetchScalarGridSpec(
                num_scalar_prefetch=0,
                grid=(pl.cdiv(B, tb),),
                in_specs=[
                    pl.BlockSpec((tb, ND), lambda i: (i, 0)),
                    # Resident operands: constant index_map, single-buffered.
                    pl.BlockSpec((ND, ND), lambda i: (0, 0),
                                 pipeline_mode=pl.Buffered(1)),
                    pl.BlockSpec((1, ND), lambda i: (0, 0),
                                 pipeline_mode=pl.Buffered(1)),
                ],
                out_specs=pl.BlockSpec((tb, ND), lambda i: (i, 0)),
            ),
            compiler_params=pltpu.CompilerParams(
                dimension_semantics=("parallel",),
                vmem_limit_bytes=vmem_limit),
        )(xf, wk, bk)
        return out.reshape(B, N, D)

    # ------------------------------------------------------------------ #
    # Fallback: minimal-FLOP batch-tiled blocks; weight dtype matches x.
    # ------------------------------------------------------------------ #
    wf = w.astype(x.dtype)
    b2d = b.reshape(N, 1).astype(jnp.float32)
    if batch_tile is None:
        tb = min(_pick_batch_tile(B, ND * itemsize), 32)   # cap the static unroll
        tb = _split_for_megacore(B, tb)
    else:
        tb = min(batch_tile, B)

    tile_bytes = tb * ND * itemsize
    vmem_limit = N * N * wf.dtype.itemsize + N * 4 + 4 * tile_bytes + (8 << 20)
    vmem_limit = int(min(max(vmem_limit, 16 << 20), min(vmem_cap, 64 << 20)))

    # TODO(synk): for D < 128 the (tb, N, D) output block still uses masked
    # stores; a fully lane-dense flat store would need an in-kernel
    # (N, D)->(1, N*D) relayout, skipped here for lowering robustness.
    return pl.pallas_call(
        _block_kernel,
        out_shape=jax.ShapeDtypeStruct((B, N, D), x.dtype),
        grid_spec=pltpu.PrefetchScalarGridSpec(
            num_scalar_prefetch=0,
            grid=(pl.cdiv(B, tb),),
            in_specs=[
                pl.BlockSpec((tb, N, D), lambda i: (i, 0, 0)),
                pl.BlockSpec((N, N), lambda i: (0, 0),
                             pipeline_mode=pl.Buffered(1)),
                pl.BlockSpec((N, 1), lambda i: (0, 0),
                             pipeline_mode=pl.Buffered(1)),
            ],
            out_specs=pl.BlockSpec((tb, N, D), lambda i: (i, 0, 0)),
        ),
        compiler_params=pltpu.CompilerParams(
            dimension_semantics=("parallel",),
            vmem_limit_bytes=vmem_limit),
    )(x, wf, b2d)


def spatial_fc_ref(x, w, b):
    # transpose -> Linear over last axis (y = x @ W^T + b) -> transpose back
    xt = jnp.swapaxes(x, 1, 2)                     # (B, D, N)
    yt = jnp.einsum("bdn,mn->bdm", xt, w) + b
    return jnp.swapaxes(yt, 1, 2)                  # (B, N, D)


if __name__ == "__main__":
    key = jax.random.PRNGKey(0)
    kx, kw, kb, kx2 = jax.random.split(key, 4)

    N, D = 16, 32                       # nn.Linear(dim, dim) with dim == N
    bound = 1.0 / (N ** 0.5)            # deterministic Linear-style init
    w = jax.random.uniform(kw, (N, N), minval=-bound, maxval=bound,
                           dtype=jnp.float32)
    b = jax.random.uniform(kb, (N,), minval=-bound, maxval=bound,
                           dtype=jnp.float32)

    # Hoist the kron weight / repeated bias build out of the per-call path.
    kron_params = make_spatial_fc_kron_params(w, b, D)

    # Small shape consistent with the module forward: (batch=2, seq=16, feat=32).
    x = jax.random.normal(kx, (2, N, D), dtype=jnp.float32)
    out = jax.block_until_ready(spatial_fc(x, w, b, kron_params=kron_params))
    ref = spatial_fc_ref(x, w, b)
    assert out.shape == x.shape
    assert jnp.allclose(out, ref, atol=2e-2, rtol=2e-2)   # bf16 MXU path

    # Multi-step batch-tiled grid on the lane-dense kron path.
    x2 = jax.random.normal(kx2, (24, N, D), dtype=jnp.float32)
    ref2 = spatial_fc_ref(x2, w, b)
    out2 = jax.block_until_ready(
        spatial_fc(x2, w, b, batch_tile=8, kron_params=kron_params))
    assert jnp.allclose(out2, ref2, atol=2e-2, rtol=2e-2)

    # Auto tiling (exercises the megacore 2-step split of a 1-step grid).
    out2b = jax.block_until_ready(spatial_fc(x2, w, b, kron_params=kron_params))
    assert jnp.allclose(out2b, ref2, atol=2e-2, rtol=2e-2)

    # Non-kron fallback path (exact f32, weights match x dtype).
    out3 = jax.block_until_ready(
        spatial_fc(x2, w, b, batch_tile=8, kron_weight_limit_bytes=0))
    assert jnp.allclose(out3, ref2, atol=1e-4, rtol=1e-4)

    print("KERNEL_OK")
</pallas_src>

<mosaic_0001>
module attributes {stable_mosaic.version = 11 : i64} {
  func.func @_kron_kernel(%arg0: i32, %arg1: memref<2x512xf32, #tpu.memory_space<vmem>>, %arg2: memref<512x512xbf16, #tpu.memory_space<vmem>>, %arg3: memref<1x512xf32, #tpu.memory_space<vmem>>, %arg4: memref<2x512xf32, #tpu.memory_space<vmem>>) attributes {dimension_semantics = [#tpu.dimension_semantics<parallel>], iteration_bounds = array<i64: 1>, scalar_prefetch = 0 : i64, scratch_operands = 0 : i64, tpu.core_type = #tpu.core_type<tc>, window_params = [{transform_indices = @transform_0, window_bounds = array<i64: 2, 512>}, {pipeline_mode = #tpu.pipeline_mode<synchronous>, transform_indices = @transform_1, window_bounds = array<i64: 512, 512>}, {pipeline_mode = #tpu.pipeline_mode<synchronous>, transform_indices = @transform_2, window_bounds = array<i64: 1, 512>}, {transform_indices = @transform_3, window_bounds = array<i64: 2, 512>}]} {
    %c0 = arith.constant 0 : index
    %c0_0 = arith.constant 0 : index
    %0 = vector.load %arg1[%c0, %c0_0] : memref<2x512xf32, #tpu.memory_space<vmem>>, vector<2x512xf32>
    %1 = arith.truncf %0 : vector<2x512xf32> to vector<2x512xbf16>
    %c0_1 = arith.constant 0 : index
    %c0_2 = arith.constant 0 : index
    %2 = vector.load %arg2[%c0_1, %c0_2] : memref<512x512xbf16, #tpu.memory_space<vmem>>, vector<512x512xbf16>
    %cst = arith.constant dense<0.000000e+00> : vector<2x512xf32>
    %3 = tpu.matmul %1, %2, %cst {dimension_numbers = #tpu.dot_dimension_numbers<[1], [0], [0], [1], [0, 0, 1, 1], [], []>} : vector<2x512xbf16>, vector<512x512xbf16>, vector<2x512xf32> -> vector<2x512xf32>
    %c0_3 = arith.constant 0 : index
    %c0_4 = arith.constant 0 : index
    %4 = vector.load %arg3[%c0_3, %c0_4] : memref<1x512xf32, #tpu.memory_space<vmem>>, vector<1x512xf32>
    %5 = vector.broadcast %4 : vector<1x512xf32> to vector<2x512xf32>
    %6 = arith.addf %3, %5 : vector<2x512xf32>
    %c0_5 = arith.constant 0 : index
    %c0_6 = arith.constant 0 : index
    %7 = vector.load %arg4[%c0_5, %c0_6] : memref<2x512xf32, #tpu.memory_space<vmem>>, vector<2x512xf32>
    tpu.vector_store %arg4[%c0_5, %c0_6], %6 {strides = array<i32>} : memref<2x512xf32, #tpu.memory_space<vmem>>, vector<2x512xf32>,
    return
  }
  func.func @transform_0(%arg0: i32) -> (i32, i32) {
    %c0_i32 = arith.constant 0 : i32
    %c0_i32_0 = arith.constant 0 : i32
    return %arg0, %c0_i32 : i32, i32
  }
  func.func @transform_1(%arg0: i32) -> (i32, i32) {
    %c0_i32 = arith.constant 0 : i32
    %c0_i32_0 = arith.constant 0 : i32
    %c0_i32_1 = arith.constant 0 : i32
    return %c0_i32, %c0_i32_0 : i32, i32
  }
  func.func @transform_2(%arg0: i32) -> (i32, i32) {
    %c0_i32 = arith.constant 0 : i32
    %c0_i32_0 = arith.constant 0 : i32
    %c0_i32_1 = arith.constant 0 : i32
    return %c0_i32, %c0_i32_0 : i32, i32
  }
  func.func @transform_3(%arg0: i32) -> (i32, i32) {
    %c0_i32 = arith.constant 0 : i32
    %c0_i32_0 = arith.constant 0 : i32
    return %arg0, %c0_i32 : i32, i32
  }
}

</mosaic_0001>

<llo_original>
// kernel: tpu_custom_call.1
$region0: #{tpu_custom_call.1}
  #allocation0 [shape = 'u32[]', space=smem, size = 0x4, offset = 0x4, fixed_abs, tag = 'smem constant byte address 0x4 - core index']
  #allocation1 [shape = 'u32[144,128]{1,0:T(1,128)}', space=vmem, size = 0x12000, scoped, tag = 'internal scratch']
  %s0 = inlined_call_operand.hbm [shape: f32[2,512], index: 0, kind: input, shape index: {}]
  %s1 = inlined_call_operand.hbm [shape: bf16[512,512], index: 1, kind: input, shape index: {}]
  %s2 = inlined_call_operand.vmem [shape: f32[1,512], index: 2, kind: input, shape index: {}]
  %s3 = inlined_call_operand.hbm [shape: f32[2,512], index: 3, kind: output, shape index: {}]
  %s4 = sld [smem:[#allocation0]]
  $region30: #{tpu_custom_call.1} parent=0
    _
  %s6 = ssub.s32 1, %s4
  %s7 = scalar_select 0, %s6, %s4
  $region1: #{tpu_custom_call.1} parent=0
    #allocation2 [shape = 'u8[4096]{0}', space=vmem, size = 0x1000, scoped, tag = 'input window, operand 0, single buffered']
    #allocation3 [shape = 's32[1]{0}', space=sflag, size = 0x4, scoped, tag = 'scoped memory for tpu_custom_call.1']
    #allocation4 [shape = 's32[1]{0}', space=sflag, size = 0x4, scoped, tag = 'scoped memory for tpu_custom_call.1']
    #allocation5 [shape = 'u8[524288]{0}', space=vmem, size = 0x80000, scoped, tag = 'input window, operand 1, single buffered']
    #allocation6 [shape = 's32[1]{0}', space=sflag, size = 0x4, scoped, tag = 'scoped memory for tpu_custom_call.1']
    #allocation7 [shape = 'u8[4096]{0}', space=vmem, size = 0x1000, scoped, tag = 'output window, operand 0, single buffered']
    %8 = vsyncpa [#allocation3], 0
    %9 = vsyncpa [#allocation6], 0
    %10 = vsyncpa [#allocation4], 0
    // Predicated region
    $region2: #{tpu_custom_call.1} parent=1 // pred_check
      _
    $region3: #{tpu_custom_call.1} parent=1 // pred_check_branch
      %12 = sbr.rel (0) target = $region5
    $region4: #{tpu_custom_call.1} parent=1 // pred_region
      %s14 = ssub.s32 128, 128
      %15 = vsyncadd [#allocation3], %s14
      %s17 = sshll.u32 [#allocation2], 4
      %s18 = int_to_ptr.vmem [resolvable:$true] %s17
      %20 = dma.hbm_to_vmem [thread:$0]  %s0, 128, %s18, [#allocation3]
    $region5: #{tpu_custom_call.1} parent=1 // pred_fallthru
      _
    // Predicated region
    $region6: #{tpu_custom_call.1} parent=1 // pred_check
      _
    $region7: #{tpu_custom_call.1} parent=1 // pred_check_branch
      %22 = sbr.rel (0) target = $region9
    $region8: #{tpu_custom_call.1} parent=1 // pred_region
      %s24 = ssub.s32 16384, 16384
      %25 = vsyncadd [#allocation6], %s24
      %s26 = sshll.u32 [#allocation5], 4
      %s27 = int_to_ptr.vmem [resolvable:$true] %s26
      %32 = dma.hbm_to_vmem [thread:$0]  %s1, 16384, %s27, [#allocation6], 256, 256, 16
    $region9: #{tpu_custom_call.1} parent=1 // pred_fallthru
      _
    // Predicated region
    $region10: #{tpu_custom_call.1} parent=1 // pred_check
      _
    $region11: #{tpu_custom_call.1} parent=1 // pred_check_branch
      %34 = sbr.rel (0) target = $region13
    $region12: #{tpu_custom_call.1} parent=1 // pred_region
      _
    $region13: #{tpu_custom_call.1} parent=1 // pred_fallthru
      _
    // Predicated region
    $region14: #{tpu_custom_call.1} parent=1 // pred_check
      _
    $region15: #{tpu_custom_call.1} parent=1 // pred_check_branch
      %36 = sbr.rel (0) target = $region17
    $region16: #{tpu_custom_call.1} parent=1 // pred_region
      %37 = dma.done [#allocation3], 128
    $region17: #{tpu_custom_call.1} parent=1 // pred_fallthru
      _
    // Predicated region
    $region18: #{tpu_custom_call.1} parent=1 // pred_check
      _
    $region19: #{tpu_custom_call.1} parent=1 // pred_check_branch
      %39 = sbr.rel (0) target = $region21
    $region20: #{tpu_custom_call.1} parent=1 // pred_region
      %40 = dma.done [#allocation6], 16384
    $region21: #{tpu_custom_call.1} parent=1 // pred_fallthru
      _
    %v41 = vld [vmem:[#allocation2] sm:$0xff]
    %v43 = vcombine.high %v41, %v41
    %v45 = vunpack.c.l.s4 1983009808
    %v46 = vunpack.c.0.s8 %v45
    %v47 = vlaneseq
    %v48 = vshrl.u32 %v47, 7
    %v49 = vsub.s32 %v46, %v48
    %v50 = vrot.slane %v41, %v49
    %v52 = vunpack.c.l.s4 1983009808
    %v53 = vunpack.c.0.s8 %v52
    %v54 = vlaneseq
    %v55 = vshrl.u32 %v54, 7
    %v56 = vsub.s32 %v53, %v55
    %v57 = vrot.slane %v43, %v56
    %v58 = vcombine.high %v50, %v50
    %v59 = vcombine.high %v57, %v57
    %v64 = vpack.c.bf16 %v50, %v50
    %v65 = vpack.c.bf16 %v58, %v58
    %v66 = vpack.c.bf16 %v57, %v57
    %v67 = vpack.c.bf16 %v59, %v59
    %v68 = vld [vmem:[#allocation5] sm:$0xff]
    %v69 = vld [vmem:[#allocation5 + $0x8] sm:$0xff]
    %v70 = vld [vmem:[#allocation5 + $0x10] sm:$0xff]
    %v71 = vld [vmem:[#allocation5 + $0x18] sm:$0xff]
    %v72 = vld [vmem:[#allocation5 + $0x20] sm:$0xff]
    %v73 = vld [vmem:[#allocation5 + $0x28] sm:$0xff]
    %v74 = vld [vmem:[#allocation5 + $0x30] sm:$0xff]
    %v75 = vld [vmem:[#allocation5 + $0x38] sm:$0xff]
    %v76 = vld [vmem:[#allocation5 + $0x40] sm:$0xff]
    %v77 = vld [vmem:[#allocation5 + $0x48] sm:$0xff]
    %v78 = vld [vmem:[#allocation5 + $0x50] sm:$0xff]
    %v79 = vld [vmem:[#allocation5 + $0x58] sm:$0xff]
    %v80 = vld [vmem:[#allocation5 + $0x60] sm:$0xff]
    %v81 = vld [vmem:[#allocation5 + $0x68] sm:$0xff]
    %v82 = vld [vmem:[#allocation5 + $0x70] sm:$0xff]
    %v83 = vld [vmem:[#allocation5 + $0x78] sm:$0xff]
    %v84 = vld [vmem:[#allocation5 + $0x80] sm:$0xff]
    %v85 = vld [vmem:[#allocation5 + $0x88] sm:$0xff]
    %v86 = vld [vmem:[#allocation5 + $0x90] sm:$0xff]
    %v87 = vld [vmem:[#allocation5 + $0x98] sm:$0xff]
    %v88 = vld [vmem:[#allocation5 + $0xa0] sm:$0xff]
    %v89 = vld [vmem:[#allocation5 + $0xa8] sm:$0xff]
    %v90 = vld [vmem:[#allocation5 + $0xb0] sm:$0xff]
    %v91 = vld [vmem:[#allocation5 + $0xb8] sm:$0xff]
    %v92 = vld [vmem:[#allocation5 + $0xc0] sm:$0xff]
    %v93 = vld [vmem:[#allocation5 + $0xc8] sm:$0xff]
    %v94 = vld [vmem:[#allocation5 + $0xd0] sm:$0xff]
    %v95 = vld [vmem:[#allocation5 + $0xd8] sm:$0xff]
    %v96 = vld [vmem:[#allocation5 + $0xe0] sm:$0xff]
    %v97 = vld [vmem:[#allocation5 + $0xe8] sm:$0xff]
    %v98 = vld [vmem:[#allocation5 + $0xf0] sm:$0xff]
    %v99 = vld [vmem:[#allocation5 + $0xf8] sm:$0xff]
    %v100 = vld [vmem:[#allocation5 + $0x100] sm:$0xff]
    %v101 = vld [vmem:[#allocation5 + $0x108] sm:$0xff]
    %v102 = vld [vmem:[#allocation5 + $0x110] sm:$0xff]
    %v103 = vld [vmem:[#allocation5 + $0x118] sm:$0xff]
    %v104 = vld [vmem:[#allocation5 + $0x120] sm:$0xff]
    %v105 = vld [vmem:[#allocation5 + $0x128] sm:$0xff]
    %v106 = vld [vmem:[#allocation5 + $0x130] sm:$0xff]
    %v107 = vld [vmem:[#allocation5 + $0x138] sm:$0xff]
    %v108 = vld [vmem:[#allocation5 + $0x140] sm:$0xff]
    %v109 = vld [vmem:[#allocation5 + $0x148] sm:$0xff]
    %v110 = vld [vmem:[#allocation5 + $0x150] sm:$0xff]
    %v111 = vld [vmem:[#allocation5 + $0x158] sm:$0xff]
    %v112 = vld [vmem:[#allocation5 + $0x160] sm:$0xff]
    %v113 = vld [vmem:[#allocation5 + $0x168] sm:$0xff]
    %v114 = vld [vmem:[#allocation5 + $0x170] sm:$0xff]
    %v115 = vld [vmem:[#allocation5 + $0x178] sm:$0xff]
    %v116 = vld [vmem:[#allocation5 + $0x180] sm:$0xff]
    %v117 = vld [vmem:[#allocation5 + $0x188] sm:$0xff]
    %v118 = vld [vmem:[#allocation5 + $0x190] sm:$0xff]
    %v119 = vld [vmem:[#allocation5 + $0x198] sm:$0xff]
    %v120 = vld [vmem:[#allocation5 + $0x1a0] sm:$0xff]
    %v121 = vld [vmem:[#allocation5 + $0x1a8] sm:$0xff]
    %v122 = vld [vmem:[#allocation5 + $0x1b0] sm:$0xff]
    %v123 = vld [vmem:[#allocation5 + $0x1b8] sm:$0xff]
    %v124 = vld [vmem:[#allocation5 + $0x1c0] sm:$0xff]
    %v125 = vld [vmem:[#allocation5 + $0x1c8] sm:$0xff]
    %v126 = vld [vmem:[#allocation5 + $0x1d0] sm:$0xff]
    %v127 = vld [vmem:[#allocation5 + $0x1d8] sm:$0xff]
    %v128 = vld [vmem:[#allocation5 + $0x1e0] sm:$0xff]
    %v129 = vld [vmem:[#allocation5 + $0x1e8] sm:$0xff]
    %v130 = vld [vmem:[#allocation5 + $0x1f0] sm:$0xff]
    %v131 = vld [vmem:[#allocation5 + $0x1f8] sm:$0xff]
    %v132 = vld [vmem:[#allocation5 + $0x200] sm:$0xff]
    %v133 = vld [vmem:[#allocation5 + $0x208] sm:$0xff]
    %v134 = vld [vmem:[#allocation5 + $0x210] sm:$0xff]
    %v135 = vld [vmem:[#allocation5 + $0x218] sm:$0xff]
    %v136 = vld [vmem:[#allocation5 + $0x220] sm:$0xff]
    %v137 = vld [vmem:[#allocation5 + $0x228] sm:$0xff]
    %v138 = vld [vmem:[#allocation5 + $0x230] sm:$0xff]
    %v139 = vld [vmem:[#allocation5 + $0x238] sm:$0xff]
    %v140 = vld [vmem:[#allocation5 + $0x240] sm:$0xff]
    %v141 = vld [vmem:[#allocation5 + $0x248] sm:$0xff]
    %v142 = vld [vmem:[#allocation5 + $0x250] sm:$0xff]
    %v143 = vld [vmem:[#allocation5 + $0x258] sm:$0xff]
    %v144 = vld [vmem:[#allocation5 + $0x260] sm:$0xff]
    %v145 = vld [vmem:[#allocation5 + $0x268] sm:$0xff]
    %v146 = vld [vmem:[#allocation5 + $0x270] sm:$0xff]
    %v147 = vld [vmem:[#allocation5 + $0x278] sm:$0xff]
    %v148 = vld [vmem:[#allocation5 + $0x280] sm:$0xff]
    %v149 = vld [vmem:[#allocation5 + $0x288] sm:$0xff]
    %v150 = vld [vmem:[#allocation5 + $0x290] sm:$0xff]
    %v151 = vld [vmem:[#allocation5 + $0x298] sm:$0xff]
    %v152 = vld [vmem:[#allocation5 + $0x2a0] sm:$0xff]
    %v153 = vld [vmem:[#allocation5 + $0x2a8] sm:$0xff]
    %v154 = vld [vmem:[#allocation5 + $0x2b0] sm:$0xff]
    %v155 = vld [vmem:[#allocation5 + $0x2b8] sm:$0xff]
    %v156 = vld [vmem:[#allocation5 + $0x2c0] sm:$0xff]
    %v157 = vld [vmem:[#allocation5 + $0x2c8] sm:$0xff]
    %v158 = vld [vmem:[#allocation5 + $0x2d0] sm:$0xff]
    %v159 = vld [vmem:[#allocation5 + $0x2d8] sm:$0xff]
    %v160 = vld [vmem:[#allocation5 + $0x2e0] sm:$0xff]
    %v161 = vld [vmem:[#allocation5 + $0x2e8] sm:$0xff]
    %v162 = vld [vmem:[#allocation5 + $0x2f0] sm:$0xff]
    %v163 = vld [vmem:[#allocation5 + $0x2f8] sm:$0xff]
    %v164 = vld [vmem:[#allocation5 + $0x300] sm:$0xff]
    %v165 = vld [vmem:[#allocation5 + $0x308] sm:$0xff]
    %v166 = vld [vmem:[#allocation5 + $0x310] sm:$0xff]
    %v167 = vld [vmem:[#allocation5 + $0x318] sm:$0xff]
    %v168 = vld [vmem:[#allocation5 + $0x320] sm:$0xff]
    %v169 = vld [vmem:[#allocation5 + $0x328] sm:$0xff]
    %v170 = vld [vmem:[#allocation5 + $0x330] sm:$0xff]
    %v171 = vld [vmem:[#allocation5 + $0x338] sm:$0xff]
    %v172 = vld [vmem:[#allocation5 + $0x340] sm:$0xff]
    %v173 = vld [vmem:[#allocation5 + $0x348] sm:$0xff]
    %v174 = vld [vmem:[#allocation5 + $0x350] sm:$0xff]
    %v175 = vld [vmem:[#allocation5 + $0x358] sm:$0xff]
    %v176 = vld [vmem:[#allocation5 + $0x360] sm:$0xff]
    %v177 = vld [vmem:[#allocation5 + $0x368] sm:$0xff]
    %v178 = vld [vmem:[#allocation5 + $0x370] sm:$0xff]
    %v179 = vld [vmem:[#allocation5 + $0x378] sm:$0xff]
    %v180 = vld [vmem:[#allocation5 + $0x380] sm:$0xff]
    %v181 = vld [vmem:[#allocation5 + $0x388] sm:$0xff]
    %v182 = vld [vmem:[#allocation5 + $0x390] sm:$0xff]
    %v183 = vld [vmem:[#allocation5 + $0x398] sm:$0xff]
    %v184 = vld [vmem:[#allocation5 + $0x3a0] sm:$0xff]
    %v185 = vld [vmem:[#allocation5 + $0x3a8] sm:$0xff]
    %v186 = vld [vmem:[#allocation5 + $0x3b0] sm:$0xff]
    %v187 = vld [vmem:[#allocation5 + $0x3b8] sm:$0xff]
    %v188 = vld [vmem:[#allocation5 + $0x3c0] sm:$0xff]
    %v189 = vld [vmem:[#allocation5 + $0x3c8] sm:$0xff]
    %v190 = vld [vmem:[#allocation5 + $0x3d0] sm:$0xff]
    %v191 = vld [vmem:[#allocation5 + $0x3d8] sm:$0xff]
    %v192 = vld [vmem:[#allocation5 + $0x3e0] sm:$0xff]
    %v193 = vld [vmem:[#allocation5 + $0x3e8] sm:$0xff]
    %v194 = vld [vmem:[#allocation5 + $0x3f0] sm:$0xff]
    %v195 = vld [vmem:[#allocation5 + $0x3f8] sm:$0xff]
    %v196 = vld [vmem:[%s2] sm:$0xf]
    %v198 = vlaneseq
    %v199 = vshrl.u32 %v198, 7
    %v200 = vsub.s32 0, %v199
    %v201 = vrot.slane %v196, %v200
    %v202 = vlaneseq
    %v203 = vshrl.u32 %v202, 7
    %v204 = vsub.s32 1, %v203
    %v205 = vrot.slane %v196, %v204
    %v206 = vlaneseq
    %v207 = vshrl.u32 %v206, 7
    %v208 = vsub.s32 2, %v207
    %v209 = vrot.slane %v196, %v208
    %v210 = vlaneseq
    %v211 = vshrl.u32 %v210, 7
    %v212 = vsub.s32 3, %v211
    %v213 = vrot.slane %v196, %v212
    %v346 = vunpack.c.l.b16 %v68
    %v347 = vunpack.c.h.b16 %v68
    %v348 = vunpack.c.l.b16 %v69
    %v349 = vunpack.c.h.b16 %v69
    %v350 = vunpack.c.l.b16 %v70
    %v351 = vunpack.c.h.b16 %v70
    %v352 = vunpack.c.l.b16 %v71
    %v353 = vunpack.c.h.b16 %v71
    %v354 = vunpack.c.l.b16 %v72
    %v355 = vunpack.c.h.b16 %v72
    %v356 = vunpack.c.l.b16 %v73
    %v357 = vunpack.c.h.b16 %v73
    %v358 = vunpack.c.l.b16 %v74
    %v359 = vunpack.c.h.b16 %v74
    %v360 = vunpack.c.l.b16 %v75
    %v361 = vunpack.c.h.b16 %v75
    %v362 = vunpack.c.l.b16 %v76
    %v363 = vunpack.c.h.b16 %v76
    %v364 = vunpack.c.l.b16 %v77
    %v365 = vunpack.c.h.b16 %v77
    %v366 = vunpack.c.l.b16 %v78
    %v367 = vunpack.c.h.b16 %v78
    %v368 = vunpack.c.l.b16 %v79
    %v369 = vunpack.c.h.b16 %v79
    %v370 = vunpack.c.l.b16 %v80
    %v371 = vunpack.c.h.b16 %v80
    %v372 = vunpack.c.l.b16 %v81
    %v373 = vunpack.c.h.b16 %v81
    %v374 = vunpack.c.l.b16 %v82
    %v375 = vunpack.c.h.b16 %v82
    %v376 = vunpack.c.l.b16 %v83
    %v377 = vunpack.c.h.b16 %v83
    %v378 = vunpack.c.l.b16 %v84
    %v379 = vunpack.c.h.b16 %v84
    %v380 = vunpack.c.l.b16 %v85
    %v381 = vunpack.c.h.b16 %v85
    %v382 = vunpack.c.l.b16 %v86
    %v383 = vunpack.c.h.b16 %v86
    %v384 = vunpack.c.l.b16 %v87
    %v385 = vunpack.c.h.b16 %v87
    %v386 = vunpack.c.l.b16 %v88
    %v387 = vunpack.c.h.b16 %v88
    %v388 = vunpack.c.l.b16 %v89
    %v389 = vunpack.c.h.b16 %v89
    %v390 = vunpack.c.l.b16 %v90
    %v391 = vunpack.c.h.b16 %v90
    %v392 = vunpack.c.l.b16 %v91
    %v393 = vunpack.c.h.b16 %v91
    %v394 = vunpack.c.l.b16 %v92
    %v395 = vunpack.c.h.b16 %v92
    %v396 = vunpack.c.l.b16 %v93
    %v397 = vunpack.c.h.b16 %v93
    %v398 = vunpack.c.l.b16 %v94
    %v399 = vunpack.c.h.b16 %v94
    %v400 = vunpack.c.l.b16 %v95
    %v401 = vunpack.c.h.b16 %v95
    %v402 = vunpack.c.l.b16 %v96
    %v403 = vunpack.c.h.b16 %v96
    %v404 = vunpack.c.l.b16 %v97
    %v405 = vunpack.c.h.b16 %v97
    %v406 = vunpack.c.l.b16 %v98
    %v407 = vunpack.c.h.b16 %v98
    %v408 = vunpack.c.l.b16 %v99
    %v409 = vunpack.c.h.b16 %v99
    %v410 = vunpack.c.l.b16 %v100
    %v411 = vunpack.c.h.b16 %v100
    %v412 = vunpack.c.l.b16 %v101
    %v413 = vunpack.c.h.b16 %v101
    %v414 = vunpack.c.l.b16 %v102
    %v415 = vunpack.c.h.b16 %v102
    %v416 = vunpack.c.l.b16 %v103
    %v417 = vunpack.c.h.b16 %v103
    %v418 = vunpack.c.l.b16 %v104
    %v419 = vunpack.c.h.b16 %v104
    %v420 = vunpack.c.l.b16 %v105
    %v421 = vunpack.c.h.b16 %v105
    %v422 = vunpack.c.l.b16 %v106
    %v423 = vunpack.c.h.b16 %v106
    %v424 = vunpack.c.l.b16 %v107
    %v425 = vunpack.c.h.b16 %v107
    %v426 = vunpack.c.l.b16 %v108
    %v427 = vunpack.c.h.b16 %v108
    %v428 = vunpack.c.l.b16 %v109
    %v429 = vunpack.c.h.b16 %v109
    %v430 = vunpack.c.l.b16 %v110
    %v431 = vunpack.c.h.b16 %v110
    %v432 = vunpack.c.l.b16 %v111
    %v433 = vunpack.c.h.b16 %v111
    %v434 = vunpack.c.l.b16 %v112
    %v435 = vunpack.c.h.b16 %v112
    %v436 = vunpack.c.l.b16 %v113
    %v437 = vunpack.c.h.b16 %v113
    %v438 = vunpack.c.l.b16 %v114
    %v439 = vunpack.c.h.b16 %v114
    %v440 = vunpack.c.l.b16 %v115
    %v441 = vunpack.c.h.b16 %v115
    %v442 = vunpack.c.l.b16 %v116
    %v443 = vunpack.c.h.b16 %v116
    %v444 = vunpack.c.l.b16 %v117
    %v445 = vunpack.c.h.b16 %v117
    %v446 = vunpack.c.l.b16 %v118
    %v447 = vunpack.c.h.b16 %v118
    %v448 = vunpack.c.l.b16 %v119
    %v449 = vunpack.c.h.b16 %v119
    %v450 = vunpack.c.l.b16 %v120
    %v451 = vunpack.c.h.b16 %v120
    %v452 = vunpack.c.l.b16 %v121
    %v453 = vunpack.c.h.b16 %v121
    %v454 = vunpack.c.l.b16 %v122
    %v455 = vunpack.c.h.b16 %v122
    %v456 = vunpack.c.l.b16 %v123
    %v457 = vunpack.c.h.b16 %v123
    %v458 = vunpack.c.l.b16 %v124
    %v459 = vunpack.c.h.b16 %v124
    %v460 = vunpack.c.l.b16 %v125
    %v461 = vunpack.c.h.b16 %v125
    %v462 = vunpack.c.l.b16 %v126
    %v463 = vunpack.c.h.b16 %v126
    %v464 = vunpack.c.l.b16 %v127
    %v465 = vunpack.c.h.b16 %v127
    %v466 = vunpack.c.l.b16 %v128
    %v467 = vunpack.c.h.b16 %v128
    %v468 = vunpack.c.l.b16 %v129
    %v469 = vunpack.c.h.b16 %v129
    %v470 = vunpack.c.l.b16 %v130
    %v471 = vunpack.c.h.b16 %v130
    %v472 = vunpack.c.l.b16 %v131
    %v473 = vunpack.c.h.b16 %v131
    %v474 = vunpack.c.l.b16 %v132
    %v475 = vunpack.c.h.b16 %v132
    %v476 = vunpack.c.l.b16 %v133
    %v477 = vunpack.c.h.b16 %v133
    %v478 = vunpack.c.l.b16 %v134
    %v479 = vunpack.c.h.b16 %v134
    %v480 = vunpack.c.l.b16 %v135
    %v481 = vunpack.c.h.b16 %v135
    %v482 = vunpack.c.l.b16 %v136
    %v483 = vunpack.c.h.b16 %v136
    %v484 = vunpack.c.l.b16 %v137
    %v485 = vunpack.c.h.b16 %v137
    %v486 = vunpack.c.l.b16 %v138
    %v487 = vunpack.c.h.b16 %v138
    %v488 = vunpack.c.l.b16 %v139
    %v489 = vunpack.c.h.b16 %v139
    %v490 = vunpack.c.l.b16 %v140
    %v491 = vunpack.c.h.b16 %v140
    %v492 = vunpack.c.l.b16 %v141
    %v493 = vunpack.c.h.b16 %v141
    %v494 = vunpack.c.l.b16 %v142
    %v495 = vunpack.c.h.b16 %v142
    %v496 = vunpack.c.l.b16 %v143
    %v497 = vunpack.c.h.b16 %v143
    %v498 = vunpack.c.l.b16 %v144
    %v499 = vunpack.c.h.b16 %v144
    %v500 = vunpack.c.l.b16 %v145
    %v501 = vunpack.c.h.b16 %v145
    %v502 = vunpack.c.l.b16 %v146
    %v503 = vunpack.c.h.b16 %v146
    %v504 = vunpack.c.l.b16 %v147
    %v505 = vunpack.c.h.b16 %v147
    %v506 = vunpack.c.l.b16 %v148
    %v507 = vunpack.c.h.b16 %v148
    %v508 = vunpack.c.l.b16 %v149
    %v509 = vunpack.c.h.b16 %v149
    %v510 = vunpack.c.l.b16 %v150
    %v511 = vunpack.c.h.b16 %v150
    %v512 = vunpack.c.l.b16 %v151
    %v513 = vunpack.c.h.b16 %v151
    %v514 = vunpack.c.l.b16 %v152
    %v515 = vunpack.c.h.b16 %v152
    %v516 = vunpack.c.l.b16 %v153
    %v517 = vunpack.c.h.b16 %v153
    %v518 = vunpack.c.l.b16 %v154
    %v519 = vunpack.c.h.b16 %v154
    %v520 = vunpack.c.l.b16 %v155
    %v521 = vunpack.c.h.b16 %v155
    %v522 = vunpack.c.l.b16 %v156
    %v523 = vunpack.c.h.b16 %v156
    %v524 = vunpack.c.l.b16 %v157
    %v525 = vunpack.c.h.b16 %v157
    %v526 = vunpack.c.l.b16 %v158
    %v527 = vunpack.c.h.b16 %v158
    %v528 = vunpack.c.l.b16 %v159
    %v529 = vunpack.c.h.b16 %v159
    %v530 = vunpack.c.l.b16 %v160
    %v531 = vunpack.c.h.b16 %v160
    %v532 = vunpack.c.l.b16 %v161
    %v533 = vunpack.c.h.b16 %v161
    %v534 = vunpack.c.l.b16 %v162
    %v535 = vunpack.c.h.b16 %v162
    %v536 = vunpack.c.l.b16 %v163
    %v537 = vunpack.c.h.b16 %v163
    %v538 = vunpack.c.l.b16 %v164
    %v539 = vunpack.c.h.b16 %v164
    %v540 = vunpack.c.l.b16 %v165
    %v541 = vunpack.c.h.b16 %v165
    %v542 = vunpack.c.l.b16 %v166
    %v543 = vunpack.c.h.b16 %v166
    %v544 = vunpack.c.l.b16 %v167
    %v545 = vunpack.c.h.b16 %v167
    %v546 = vunpack.c.l.b16 %v168
    %v547 = vunpack.c.h.b16 %v168
    %v548 = vunpack.c.l.b16 %v169
    %v549 = vunpack.c.h.b16 %v169
    %v550 = vunpack.c.l.b16 %v170
    %v551 = vunpack.c.h.b16 %v170
    %v552 = vunpack.c.l.b16 %v171
    %v553 = vunpack.c.h.b16 %v171
    %v554 = vunpack.c.l.b16 %v172
    %v555 = vunpack.c.h.b16 %v172
    %v556 = vunpack.c.l.b16 %v173
    %v557 = vunpack.c.h.b16 %v173
    %v558 = vunpack.c.l.b16 %v174
    %v559 = vunpack.c.h.b16 %v174
    %v560 = vunpack.c.l.b16 %v175
    %v561 = vunpack.c.h.b16 %v175
    %v562 = vunpack.c.l.b16 %v176
    %v563 = vunpack.c.h.b16 %v176
    %v564 = vunpack.c.l.b16 %v177
    %v565 = vunpack.c.h.b16 %v177
    %v566 = vunpack.c.l.b16 %v178
    %v567 = vunpack.c.h.b16 %v178
    %v568 = vunpack.c.l.b16 %v179
    %v569 = vunpack.c.h.b16 %v179
    %v570 = vunpack.c.l.b16 %v180
    %v571 = vunpack.c.h.b16 %v180
    %v572 = vunpack.c.l.b16 %v181
    %v573 = vunpack.c.h.b16 %v181
    %v574 = vunpack.c.l.b16 %v182
    %v575 = vunpack.c.h.b16 %v182
    %v576 = vunpack.c.l.b16 %v183
    %v577 = vunpack.c.h.b16 %v183
    %v578 = vunpack.c.l.b16 %v184
    %v579 = vunpack.c.h.b16 %v184
    %v580 = vunpack.c.l.b16 %v185
    %v581 = vunpack.c.h.b16 %v185
    %v582 = vunpack.c.l.b16 %v186
    %v583 = vunpack.c.h.b16 %v186
    %v584 = vunpack.c.l.b16 %v187
    %v585 = vunpack.c.h.b16 %v187
    %v586 = vunpack.c.l.b16 %v188
    %v587 = vunpack.c.h.b16 %v188
    %v588 = vunpack.c.l.b16 %v189
    %v589 = vunpack.c.h.b16 %v189
    %v590 = vunpack.c.l.b16 %v190
    %v591 = vunpack.c.h.b16 %v190
    %v592 = vunpack.c.l.b16 %v191
    %v593 = vunpack.c.h.b16 %v191
    %v594 = vunpack.c.l.b16 %v192
    %v595 = vunpack.c.h.b16 %v192
    %v596 = vunpack.c.l.b16 %v193
    %v597 = vunpack.c.h.b16 %v193
    %v598 = vunpack.c.l.b16 %v194
    %v599 = vunpack.c.h.b16 %v194
    %v600 = vunpack.c.l.b16 %v195
    %v601 = vunpack.c.h.b16 %v195
    %v602 = vpack.c.b16 %v350, %v346
    %v603 = vpack.c.b16 %v351, %v347
    %v604 = vpack.c.b16 %v352, %v348
    %v605 = vpack.c.b16 %v353, %v349
    %v606 = vpack.c.b16 %v358, %v354
    %v607 = vpack.c.b16 %v359, %v355
    %v608 = vpack.c.b16 %v360, %v356
    %v609 = vpack.c.b16 %v361, %v357
    %v610 = vpack.c.b16 %v366, %v362
    %v611 = vpack.c.b16 %v367, %v363
    %v612 = vpack.c.b16 %v368, %v364
    %v613 = vpack.c.b16 %v369, %v365
    %v614 = vpack.c.b16 %v374, %v370
    %v615 = vpack.c.b16 %v375, %v371
    %v616 = vpack.c.b16 %v376, %v372
    %v617 = vpack.c.b16 %v377, %v373
    %v618 = vpack.c.b16 %v382, %v378
    %v619 = vpack.c.b16 %v383, %v379
    %v620 = vpack.c.b16 %v384, %v380
    %v621 = vpack.c.b16 %v385, %v381
    %v622 = vpack.c.b16 %v390, %v386
    %v623 = vpack.c.b16 %v391, %v387
    %v624 = vpack.c.b16 %v392, %v388
    %v625 = vpack.c.b16 %v393, %v389
    %v626 = vpack.c.b16 %v398, %v394
    %v627 = vpack.c.b16 %v399, %v395
    %v628 = vpack.c.b16 %v400, %v396
    %v629 = vpack.c.b16 %v401, %v397
    %v630 = vpack.c.b16 %v406, %v402
    %v631 = vpack.c.b16 %v407, %v403
    %v632 = vpack.c.b16 %v408, %v404
    %v633 = vpack.c.b16 %v409, %v405
    %v634 = vpack.c.b16 %v414, %v410
    %v635 = vpack.c.b16 %v415, %v411
    %v636 = vpack.c.b16 %v416, %v412
    %v637 = vpack.c.b16 %v417, %v413
    %v638 = vpack.c.b16 %v422, %v418
    %v639 = vpack.c.b16 %v423, %v419
    %v640 = vpack.c.b16 %v424, %v420
    %v641 = vpack.c.b16 %v425, %v421
    %v642 = vpack.c.b16 %v430, %v426
    %v643 = vpack.c.b16 %v431, %v427
    %v644 = vpack.c.b16 %v432, %v428
    %v645 = vpack.c.b16 %v433, %v429
    %v646 = vpack.c.b16 %v438, %v434
    %v647 = vpack.c.b16 %v439, %v435
    %v648 = vpack.c.b16 %v440, %v436
    %v649 = vpack.c.b16 %v441, %v437
    %v650 = vpack.c.b16 %v446, %v442
    %v651 = vpack.c.b16 %v447, %v443
    %v652 = vpack.c.b16 %v448, %v444
    %v653 = vpack.c.b16 %v449, %v445
    %v654 = vpack.c.b16 %v454, %v450
    %v655 = vpack.c.b16 %v455, %v451
    %v656 = vpack.c.b16 %v456, %v452
    %v657 = vpack.c.b16 %v457, %v453
    %v658 = vpack.c.b16 %v462, %v458
    %v659 = vpack.c.b16 %v463, %v459
    %v660 = vpack.c.b16 %v464, %v460
    %v661 = vpack.c.b16 %v465, %v461
    %v662 = vpack.c.b16 %v470, %v466
    %v663 = vpack.c.b16 %v471, %v467
    %v664 = vpack.c.b16 %v472, %v468
    %v665 = vpack.c.b16 %v473, %v469
    %v666 = vpack.c.b16 %v478, %v474
    %v667 = vpack.c.b16 %v479, %v475
    %v668 = vpack.c.b16 %v480, %v476
    %v669 = vpack.c.b16 %v481, %v477
    %v670 = vpack.c.b16 %v486, %v482
    %v671 = vpack.c.b16 %v487, %v483
    %v672 = vpack.c.b16 %v488, %v484
    %v673 = vpack.c.b16 %v489, %v485
    %v674 = vpack.c.b16 %v494, %v490
    %v675 = vpack.c.b16 %v495, %v491
    %v676 = vpack.c.b16 %v496, %v492
    %v677 = vpack.c.b16 %v497, %v493
    %v678 = vpack.c.b16 %v502, %v498
    %v679 = vpack.c.b16 %v503, %v499
    %v680 = vpack.c.b16 %v504, %v500
    %v681 = vpack.c.b16 %v505, %v501
    %v682 = vpack.c.b16 %v510, %v506
    %v683 = vpack.c.b16 %v511, %v507
    %v684 = vpack.c.b16 %v512, %v508
    %v685 = vpack.c.b16 %v513, %v509
    %v686 = vpack.c.b16 %v518, %v514
    %v687 = vpack.c.b16 %v519, %v515
    %v688 = vpack.c.b16 %v520, %v516
    %v689 = vpack.c.b16 %v521, %v517
    %v690 = vpack.c.b16 %v526, %v522
    %v691 = vpack.c.b16 %v527, %v523
    %v692 = vpack.c.b16 %v528, %v524
    %v693 = vpack.c.b16 %v529, %v525
    %v694 = vpack.c.b16 %v534, %v530
    %v695 = vpack.c.b16 %v535, %v531
    %v696 = vpack.c.b16 %v536, %v532
    %v697 = vpack.c.b16 %v537, %v533
    %v698 = vpack.c.b16 %v542, %v538
    %v699 = vpack.c.b16 %v543, %v539
    %v700 = vpack.c.b16 %v544, %v540
    %v701 = vpack.c.b16 %v545, %v541
    %v702 = vpack.c.b16 %v550, %v546
    %v703 = vpack.c.b16 %v551, %v547
    %v704 = vpack.c.b16 %v552, %v548
    %v705 = vpack.c.b16 %v553, %v549
    %v706 = vpack.c.b16 %v558, %v554
    %v707 = vpack.c.b16 %v559, %v555
    %v708 = vpack.c.b16 %v560, %v556
    %v709 = vpack.c.b16 %v561, %v557
    %v710 = vpack.c.b16 %v566, %v562
    %v711 = vpack.c.b16 %v567, %v563
    %v712 = vpack.c.b16 %v568, %v564
    %v713 = vpack.c.b16 %v569, %v565
    %v714 = vpack.c.b16 %v574, %v570
    %v715 = vpack.c.b16 %v575, %v571
    %v716 = vpack.c.b16 %v576, %v572
    %v717 = vpack.c.b16 %v577, %v573
    %v718 = vpack.c.b16 %v582, %v578
    %v719 = vpack.c.b16 %v583, %v579
    %v720 = vpack.c.b16 %v584, %v580
    %v721 = vpack.c.b16 %v585, %v581
    %v722 = vpack.c.b16 %v590, %v586
    %v723 = vpack.c.b16 %v591, %v587
    %v724 = vpack.c.b16 %v592, %v588
    %v725 = vpack.c.b16 %v593, %v589
    %v726 = vpack.c.b16 %v598, %v594
    %v727 = vpack.c.b16 %v599, %v595
    %v728 = vpack.c.b16 %v600, %v596
    %v729 = vpack.c.b16 %v601, %v597
    %858 = vmatprep.subr.bf16.mxu0 %v603
    %859 = vmatpush1.bf16.msra.mxu0 %v602
    %860 = vmatprep.subr.bf16.mxu0 %v607
    %861 = vmatpush1.bf16.msra.mxu0 %v606
    %862 = vmatprep.subr.bf16.mxu0 %v611
    %863 = vmatpush1.bf16.msra.mxu0 %v610
    %864 = vmatprep.subr.bf16.mxu0 %v615
    %865 = vmatpush1.bf16.msra.mxu0 %v614
    %866 = vmatprep.subr.bf16.mxu0 %v619
    %867 = vmatpush1.bf16.msra.mxu0 %v618
    %868 = vmatprep.subr.bf16.mxu0 %v623
    %869 = vmatpush1.bf16.msra.mxu0 %v622
    %870 = vmatprep.subr.bf16.mxu0 %v627
    %871 = vmatpush1.bf16.msra.mxu0 %v626
    %872 = vmatprep.subr.bf16.mxu0 %v631
    %873 = vmatpush1.bf16.msra.mxu0 %v630
    %874 = vmatprep.subr.bf16.mxu0 %v635
    %875 = vmatpush1.bf16.msra.mxu0 %v634
    %876 = vmatprep.subr.bf16.mxu0 %v639
    %877 = vmatpush1.bf16.msra.mxu0 %v638
    %878 = vmatprep.subr.bf16.mxu0 %v643
    %879 = vmatpush1.bf16.msra.mxu0 %v642
    %880 = vmatprep.subr.bf16.mxu0 %v647
    %881 = vmatpush1.bf16.msra.mxu0 %v646
    %882 = vmatprep.subr.bf16.mxu0 %v651
    %883 = vmatpush1.bf16.msra.mxu0 %v650
    %884 = vmatprep.subr.bf16.mxu0 %v655
    %885 = vmatpush1.bf16.msra.mxu0 %v654
    %886 = vmatprep.subr.bf16.mxu0 %v659
    %887 = vmatpush1.bf16.msra.mxu0 %v658
    %888 = vmatprep.subr.bf16.mxu0 %v663
    %889 = vmatpush1.bf16.msra.mxu0 %v662
    %890 = vmatprep.mubr.bf16.mxu0 %v65
    %891 = vmatmul.mubr.bf16.gmra.mrb[0].mxu0 %v64
    %v892 = vpop.f32.mrb[0].mxu0
    %v893 = vadd.f32 %v201, %v892
    %v894 = vpop.f32.mrb[0].mxu0
    %v895 = vadd.f32 %v205, %v894
    %v896 = vpop.f32.mrb[0].mxu0
    %v897 = vpop.f32.mrb[0].mxu0
    %898 = vdwg.mxu0
    %899 = vmatprep.subr.bf16.mxu0 %v667
    %900 = vmatpush1.bf16.msra.mxu0 %v666
    %901 = vmatprep.subr.bf16.mxu0 %v671
    %902 = vmatpush1.bf16.msra.mxu0 %v670
    %903 = vmatprep.subr.bf16.mxu0 %v675
    %904 = vmatpush1.bf16.msra.mxu0 %v674
    %905 = vmatprep.subr.bf16.mxu0 %v679
    %906 = vmatpush1.bf16.msra.mxu0 %v678
    %907 = vmatprep.subr.bf16.mxu0 %v683
    %908 = vmatpush1.bf16.msra.mxu0 %v682
    %909 = vmatprep.subr.bf16.mxu0 %v687
    %910 = vmatpush1.bf16.msra.mxu0 %v686
    %911 = vmatprep.subr.bf16.mxu0 %v691
    %912 = vmatpush1.bf16.msra.mxu0 %v690
    %913 = vmatprep.subr.bf16.mxu0 %v695
    %914 = vmatpush1.bf16.msra.mxu0 %v694
    %915 = vmatprep.subr.bf16.mxu0 %v699
    %916 = vmatpush1.bf16.msra.mxu0 %v698
    %917 = vmatprep.subr.bf16.mxu0 %v703
    %918 = vmatpush1.bf16.msra.mxu0 %v702
    %919 = vmatprep.subr.bf16.mxu0 %v707
    %920 = vmatpush1.bf16.msra.mxu0 %v706
    %921 = vmatprep.subr.bf16.mxu0 %v711
    %922 = vmatpush1.bf16.msra.mxu0 %v710
    %923 = vmatprep.subr.bf16.mxu0 %v715
    %924 = vmatpush1.bf16.msra.mxu0 %v714
    %925 = vmatprep.subr.bf16.mxu0 %v719
    %926 = vmatpush1.bf16.msra.mxu0 %v718
    %927 = vmatprep.subr.bf16.mxu0 %v723
    %928 = vmatpush1.bf16.msra.mxu0 %v722
    %929 = vmatprep.subr.bf16.mxu0 %v727
    %930 = vmatpush1.bf16.msra.mxu0 %v726
    %931 = vmatprep.mubr.bf16.mxu0 %v67
    %932 = vmatmul.mubr.bf16.gmra.mrb[0].mxu0 %v66
    %v933 = vpop.f32.mrb[0].mxu0
    %v934 = vadd.f32 %v893, %v933
    %v935 = vpop.f32.mrb[0].mxu0
    %v936 = vadd.f32 %v895, %v935
    %v937 = vpop.f32.mrb[0].mxu0
    %v938 = vpop.f32.mrb[0].mxu0
    %939 = vdwg.mxu0
    %940 = vmatprep.subr.bf16.mxu0 %v605
    %941 = vmatpush1.bf16.msra.mxu0 %v604
    %942 = vmatprep.subr.bf16.mxu0 %v609
    %943 = vmatpush1.bf16.msra.mxu0 %v608
    %944 = vmatprep.subr.bf16.mxu0 %v613
    %945 = vmatpush1.bf16.msra.mxu0 %v612
    %946 = vmatprep.subr.bf16.mxu0 %v617
    %947 = vmatpush1.bf16.msra.mxu0 %v616
    %948 = vmatprep.subr.bf16.mxu0 %v621
    %949 = vmatpush1.bf16.msra.mxu0 %v620
    %950 = vmatprep.subr.bf16.mxu0 %v625
    %951 = vmatpush1.bf16.msra.mxu0 %v624
    %952 = vmatprep.subr.bf16.mxu0 %v629
    %953 = vmatpush1.bf16.msra.mxu0 %v628
    %954 = vmatprep.subr.bf16.mxu0 %v633
    %955 = vmatpush1.bf16.msra.mxu0 %v632
    %956 = vmatprep.subr.bf16.mxu0 %v637
    %957 = vmatpush1.bf16.msra.mxu0 %v636
    %958 = vmatprep.subr.bf16.mxu0 %v641
    %959 = vmatpush1.bf16.msra.mxu0 %v640
    %960 = vmatprep.subr.bf16.mxu0 %v645
    %961 = vmatpush1.bf16.msra.mxu0 %v644
    %962 = vmatprep.subr.bf16.mxu0 %v649
    %963 = vmatpush1.bf16.msra.mxu0 %v648
    %964 = vmatprep.subr.bf16.mxu0 %v653
    %965 = vmatpush1.bf16.msra.mxu0 %v652
    %966 = vmatprep.subr.bf16.mxu0 %v657
    %967 = vmatpush1.bf16.msra.mxu0 %v656
    %968 = vmatprep.subr.bf16.mxu0 %v661
    %969 = vmatpush1.bf16.msra.mxu0 %v660
    %970 = vmatprep.subr.bf16.mxu0 %v665
    %971 = vmatpush1.bf16.msra.mxu0 %v664
    %972 = vmatprep.mubr.bf16.mxu0 %v65
    %973 = vmatmul.mubr.bf16.gmra.mrb[0].mxu0 %v64
    %v974 = vpop.f32.mrb[0].mxu0
    %v975 = vadd.f32 %v209, %v974
    %v976 = vpop.f32.mrb[0].mxu0
    %v977 = vadd.f32 %v213, %v976
    %v978 = vpop.f32.mrb[0].mxu0
    %v979 = vpop.f32.mrb[0].mxu0
    %980 = vdwg.mxu0
    %981 = vmatprep.subr.bf16.mxu0 %v669
    %982 = vmatpush1.bf16.msra.mxu0 %v668
    %983 = vmatprep.subr.bf16.mxu0 %v673
    %984 = vmatpush1.bf16.msra.mxu0 %v672
    %985 = vmatprep.subr.bf16.mxu0 %v677
    %986 = vmatpush1.bf16.msra.mxu0 %v676
    %987 = vmatprep.subr.bf16.mxu0 %v681
    %988 = vmatpush1.bf16.msra.mxu0 %v680
    %989 = vmatprep.subr.bf16.mxu0 %v685
    %990 = vmatpush1.bf16.msra.mxu0 %v684
    %991 = vmatprep.subr.bf16.mxu0 %v689
    %992 = vmatpush1.bf16.msra.mxu0 %v688
    %993 = vmatprep.subr.bf16.mxu0 %v693
    %994 = vmatpush1.bf16.msra.mxu0 %v692
    %995 = vmatprep.subr.bf16.mxu0 %v697
    %996 = vmatpush1.bf16.msra.mxu0 %v696
    %997 = vmatprep.subr.bf16.mxu0 %v701
    %998 = vmatpush1.bf16.msra.mxu0 %v700
    %999 = vmatprep.subr.bf16.mxu0 %v705
    %1000 = vmatpush1.bf16.msra.mxu0 %v704
    %1001 = vmatprep.subr.bf16.mxu0 %v709
    %1002 = vmatpush1.bf16.msra.mxu0 %v708
    %1003 = vmatprep.subr.bf16.mxu0 %v713
    %1004 = vmatpush1.bf16.msra.mxu0 %v712
    %1005 = vmatprep.subr.bf16.mxu0 %v717
    %1006 = vmatpush1.bf16.msra.mxu0 %v716
    %1007 = vmatprep.subr.bf16.mxu0 %v721
    %1008 = vmatpush1.bf16.msra.mxu0 %v720
    %1009 = vmatprep.subr.bf16.mxu0 %v725
    %1010 = vmatpush1.bf16.msra.mxu0 %v724
    %1011 = vmatprep.subr.bf16.mxu0 %v729
    %1012 = vmatpush1.bf16.msra.mxu0 %v728
    %1013 = vmatprep.mubr.bf16.mxu0 %v67
    %1014 = vmatmul.mubr.bf16.gmra.mrb[0].mxu0 %v66
    %v1015 = vpop.f32.mrb[0].mxu0
    %v1016 = vadd.f32 %v975, %v1015
    %v1017 = vpop.f32.mrb[0].mxu0
    %v1018 = vadd.f32 %v977, %v1017
    %v1019 = vpop.f32.mrb[0].mxu0
    %v1020 = vpop.f32.mrb[0].mxu0
    %1021 = vdwg.mxu0
    %v1026 = vcombine.low %v934, %v936
    %v1027 = vcombine.low %v1016, %v1018
    %v1029 = vunpack.c.l.s4 1983009808
    %v1030 = vunpack.c.0.s8 %v1029
    %v1031 = vlaneseq
    %v1032 = vshrl.u32 %v1031, 7
    %v1033 = vsub.s32 %v1030, %v1032
    %v1034 = vrot.slane %v1026, %v1033
    %v1036 = vunpack.c.l.s4 1983009808
    %v1037 = vunpack.c.0.s8 %v1036
    %v1038 = vlaneseq
    %v1039 = vshrl.u32 %v1038, 7
    %v1040 = vsub.s32 %v1037, %v1039
    %v1041 = vrot.slane %v1027, %v1040
    %v1042 = vcombine.low %v1034, %v1041
    %1044 = vst [vmem:[#allocation7] sm:$0xff] %v1042
    // Predicated region
    $region22: #{tpu_custom_call.1} parent=1 // pred_check
      _
    $region23: #{tpu_custom_call.1} parent=1 // pred_check_branch
      %1046 = sbr.rel (0) target = $region25
    $region24: #{tpu_custom_call.1} parent=1 // pred_region
      %s1048 = ssub.s32 128, 128
      %1049 = vsyncadd [#allocation4], %s1048
      %s1051 = sshll.u32 [#allocation7], 4
      %s1052 = int_to_ptr.vmem [resolvable:$true] %s1051
      %1054 = dma.vmem_to_hbm [thread:$0]  %s1052, 128, %s3, [#allocation4]
    $region25: #{tpu_custom_call.1} parent=1 // pred_fallthru
      _
    // Predicated region
    $region26: #{tpu_custom_call.1} parent=1 // pred_check
      _
    $region27: #{tpu_custom_call.1} parent=1 // pred_check_branch
      %1056 = sbr.rel (0) target = $region29
    $region28: #{tpu_custom_call.1} parent=1 // pred_region
      %1057 = dma.done [#allocation4], 128
    $region29: #{tpu_custom_call.1} parent=1 // pred_fallthru
      _
    %1058 = vsyncpa [#allocation3], 1
    %1059 = vsyncpa [#allocation6], 1
    %1060 = vsyncpa [#allocation4], 1

</llo_original>
